<compile_context>
chip_gen: v7x
topology: tpu7x:2x2x1
jax: 0.10.0
libtpu: 0.0.40
codegen_flags: <defaults>
</compile_context>

<pallas_src>
import functools

import jax
import jax.numpy as jnp
from jax.experimental import pallas as pl
from jax.experimental.pallas import tpu as pltpu

EPSILON = 1e-7
INV_TWO_EPS = 1.0 / (2.0 + EPSILON)
CIFAR_MEAN = (0.4914, 0.4822, 0.4465)
CIFAR_STD = (0.247, 0.243, 0.261)
NUM_CLASSES = 10
NC_PAD = 128          # classes padded to a full lane width for the output store
MAX_B = 8             # images per grid step (lane-concatenated)


# ----------------------------------------------------------------------------
# Fused kernel: blend -> 3x3 conv (single K=27 matmul) -> ReLU -> pool -> FC
# One grid step == B lane-concatenated images laid out as (C, B*HW).
# ----------------------------------------------------------------------------
def _fused_forward_kernel(x_ref, coeff_ref, addterm_ref, tapmask_ref,
                          convw_ref, convb_ref, pool_ref, fcw_ref, fcb_ref,
                          out_ref, *, W, BHW):
    x = x_ref[...]                                            # (C, B*HW) f32

    # ---- trigger blend: (1-m)*x + m*p_norm, coefficients precomputed in wrapper
    blended = coeff_ref[...] * x + addterm_ref[...]           # (C, B*HW) f32

    # ---- build the 9 shifted/zero-padded taps and stack to (9*C, B*HW) ------
    tiles = []
    for t in range(9):
        di = t // 3 - 1
        dj = t % 3 - 1
        s = di * W + dj                                       # flat lane offset of this tap
        if s == 0:
            tiles.append(blended.astype(jnp.bfloat16))
        else:
            rolled = pltpu.roll(blended, shift=(-s) % BHW, axis=1)
            masked = rolled * tapmask_ref[pl.ds(t, 1), :]     # zero-pad + no cross-image leak
            tiles.append(masked.astype(jnp.bfloat16))
    stacked = jnp.concatenate(tiles, axis=0)                  # (9*C, B*HW) bf16

    # ---- conv as ONE MXU matmul, K = 9*C ------------------------------------
    conv = jnp.dot(convw_ref[...], stacked,
                   preferred_element_type=jnp.float32)        # (C_out, B*HW) f32
    relu = jnp.maximum(conv + convb_ref[...], 0.0).astype(jnp.bfloat16)

    # ---- per-image global avg pool on the MXU (1/HW folded into fc_w) -------
    pooled = jax.lax.dot_general(                             # (B, C_out) f32
        pool_ref[...], relu, (((0,), (1,)), ((), ())),
        preferred_element_type=jnp.float32)

    # ---- FC, lane-padded to 128 classes, one dense (B, 128) store -----------
    logits = jnp.dot(pooled.astype(jnp.bfloat16), fcw_ref[...],
                     preferred_element_type=jnp.float32) + fcb_ref[...]
    out_ref[...] = logits.astype(out_ref.dtype)


# ----------------------------------------------------------------------------
# Wrapper: hoisted grid-invariant prep (tanh/normalize/blend coeffs, boundary
# masks, weight reshapes) + a single pallas_call over batches of B images.
# ----------------------------------------------------------------------------
@jax.jit
def regression_model_forward(x, params):
    n, c, h, w = x.shape
    hw = h * w
    c_out = params["conv_w"].shape[1]

    # batch-block size: whole batch in one step when small; 8 per step otherwise
    # (keeps >= 2 grid blocks on larger batches so v7x can shard across its 2 TCs).
    B = min(n, MAX_B)
    n_pad = ((n + B - 1) // B) * B
    grid = n_pad // B
    bhw = B * hw

    # ---- x laid out lane-concatenated: (C, n_pad*HW), image b at lanes [b*HW, (b+1)*HW)
    x_f = x.astype(jnp.float32)
    if n_pad != n:
        x_f = jnp.pad(x_f, ((0, n_pad - n), (0, 0), (0, 0), (0, 0)))
    x_lane = x_f.reshape(n_pad, c, hw).transpose(1, 0, 2).reshape(c, n_pad * hw)

    # ---- hoisted: tanh, Normalize, and blend coefficients (computed once, not per step)
    m = jnp.tanh(params["mask_tanh"]).reshape(1, hw) * INV_TWO_EPS + 0.5       # (1, HW)
    p = jnp.tanh(params["pattern_tanh"]).reshape(c, hw) * INV_TWO_EPS + 0.5    # (C, HW)
    mean = jnp.asarray(CIFAR_MEAN, jnp.float32).reshape(c, 1)
    std = jnp.asarray(CIFAR_STD, jnp.float32).reshape(c, 1)
    p_norm = (p - mean) / std
    coeff = jnp.tile(1.0 - m, (1, B))                                          # (1, B*HW)
    addterm = jnp.tile(m * p_norm, (1, B))                                     # (C, B*HW)

    # ---- hoisted: per-tap zero-pad boundary masks over the lane-concatenated axis
    jj = jnp.arange(bhw) % hw
    hh = jj // w
    ww = jj % w
    tap_rows = []
    for t in range(9):
        di = t // 3 - 1
        dj = t % 3 - 1
        ok = (hh + di >= 0) & (hh + di < h) & (ww + dj >= 0) & (ww + dj < w)
        tap_rows.append(ok.astype(jnp.float32))
    tap_mask = jnp.stack(tap_rows, axis=0)                                     # (9, B*HW)

    # ---- classifier weights: conv taps flattened to K=9*C; pool matrix; fc (1/HW folded)
    conv_w_flat = params["conv_w"].transpose(1, 0, 2).reshape(c_out, 9 * c).astype(jnp.bfloat16)
    conv_b = params["conv_b"].reshape(c_out, 1).astype(jnp.float32)
    pool_mat = (jnp.arange(bhw)[:, None] // hw == jnp.arange(B)[None, :]).astype(jnp.bfloat16)
    fc_w = jnp.zeros((c_out, NC_PAD), jnp.float32).at[:, :NUM_CLASSES].set(
        params["fc_w"] / hw).astype(jnp.bfloat16)
    fc_b = jnp.zeros((1, NC_PAD), jnp.float32).at[0, :NUM_CLASSES].set(params["fc_b"])

    flops = grid * (2 * c_out * (9 * c) * bhw + 2 * B * c_out * bhw
                    + 2 * B * c_out * NC_PAD + 3 * c * bhw)
    bytes_accessed = (4 * x_lane.size + 4 * n_pad * NC_PAD
                      + 4 * (coeff.size + addterm.size + tap_mask.size + conv_b.size + fc_b.size)
                      + 2 * (conv_w_flat.size + pool_mat.size + fc_w.size))

    out = pl.pallas_call(
        functools.partial(_fused_forward_kernel, W=w, BHW=bhw),
        out_shape=jax.ShapeDtypeStruct((n_pad, NC_PAD), jnp.float32),
        grid=(grid,),
        in_specs=[
            pl.BlockSpec((c, bhw), lambda i: (0, i)),            # x (B images per step)
            pl.BlockSpec((1, bhw), lambda i: (0, 0)),            # (1-m)     (resident)
            pl.BlockSpec((c, bhw), lambda i: (0, 0)),            # m*p_norm  (resident)
            pl.BlockSpec((9, bhw), lambda i: (0, 0)),            # tap boundary masks
            pl.BlockSpec((c_out, 9 * c), lambda i: (0, 0)),      # conv weight (C_out, 27)
            pl.BlockSpec((c_out, 1), lambda i: (0, 0)),          # conv bias
            pl.BlockSpec((bhw, B), lambda i: (0, 0)),            # block-diag pool matrix
            pl.BlockSpec((c_out, NC_PAD), lambda i: (0, 0)),     # fc weight (1/HW folded)
            pl.BlockSpec((1, NC_PAD), lambda i: (0, 0)),         # fc bias
        ],
        out_specs=pl.BlockSpec((B, NC_PAD), lambda i: (i, 0)),
        compiler_params=pltpu.CompilerParams(
            dimension_semantics=("parallel",)),
        cost_estimate=pl.CostEstimate(
            flops=int(flops),
            transcendentals=0,
            bytes_accessed=int(bytes_accessed)),
    )(x_lane, coeff, addterm, tap_mask, conv_w_flat, conv_b, pool_mat, fc_w, fc_b)

    return out[:n, :NUM_CLASSES]


def init_params(key, c=3, h=16, w=16, c_out=16):
    k1, k2, k3, k4, k5 = jax.random.split(key, 5)
    return {
        # neural-cleanse trainables: mask is (1, H, W), pattern is (C, H, W)
        "mask_tanh": jax.random.normal(k1, (1, h, w), jnp.float32) * 0.1,
        "pattern_tanh": jax.random.normal(k2, (c, h, w), jnp.float32) * 0.1,
        # surrogate classifier parameters (synthetic): conv_w[t, o, c] is 3x3 tap t=(di+1)*3+(dj+1)
        "conv_w": jax.random.normal(k3, (9, c_out, c), jnp.float32) * 0.05,
        "conv_b": jnp.zeros((c_out,), jnp.float32),
        "fc_w": jax.random.normal(k4, (c_out, NUM_CLASSES), jnp.float32) * 0.1,
        "fc_b": jax.random.normal(k5, (NUM_CLASSES,), jnp.float32) * 0.01,
    }


if __name__ == "__main__":
    key = jax.random.PRNGKey(0)
    kx, kp = jax.random.split(key)
    x = jax.random.normal(kx, (2, 3, 16, 16), jnp.float32)    # NCHW, cifar-like (3 channels)
    params = init_params(kp)

    logits = regression_model_forward(x, params)
    jax.block_until_ready(logits)
    assert logits.shape == (2, NUM_CLASSES) and logits.dtype == jnp.float32
    print("KERNEL_OK")
</pallas_src>

<mosaic_0001>
module attributes {stable_mosaic.version = 11 : i64} {
  func.func @_fused_forward_kernel(%arg0: i32, %arg1: memref<3x512xf32, #tpu.memory_space<vmem>>, %arg2: memref<1x512xf32, #tpu.memory_space<vmem>>, %arg3: memref<3x512xf32, #tpu.memory_space<vmem>>, %arg4: memref<9x512xf32, #tpu.memory_space<vmem>>, %arg5: memref<16x27xbf16, #tpu.memory_space<vmem>>, %arg6: memref<16x1xf32, #tpu.memory_space<vmem>>, %arg7: memref<512x2xbf16, #tpu.memory_space<vmem>>, %arg8: memref<16x128xbf16, #tpu.memory_space<vmem>>, %arg9: memref<1x128xf32, #tpu.memory_space<vmem>>, %arg10: memref<2x128xf32, #tpu.memory_space<vmem>>) attributes {dimension_semantics = [#tpu.dimension_semantics<parallel>], iteration_bounds = array<i64: 1>, scalar_prefetch = 0 : i64, scratch_operands = 0 : i64, tpu.core_type = #tpu.core_type<tc>, window_params = [{transform_indices = @transform_0, window_bounds = array<i64: 3, 512>}, {pipeline_mode = #tpu.pipeline_mode<synchronous>, transform_indices = @transform_1, window_bounds = array<i64: 1, 512>}, {pipeline_mode = #tpu.pipeline_mode<synchronous>, transform_indices = @transform_2, window_bounds = array<i64: 3, 512>}, {pipeline_mode = #tpu.pipeline_mode<synchronous>, transform_indices = @transform_3, window_bounds = array<i64: 9, 512>}, {pipeline_mode = #tpu.pipeline_mode<synchronous>, transform_indices = @transform_4, window_bounds = array<i64: 16, 27>}, {pipeline_mode = #tpu.pipeline_mode<synchronous>, transform_indices = @transform_5, window_bounds = array<i64: 16, 1>}, {pipeline_mode = #tpu.pipeline_mode<synchronous>, transform_indices = @transform_6, window_bounds = array<i64: 512, 2>}, {pipeline_mode = #tpu.pipeline_mode<synchronous>, transform_indices = @transform_7, window_bounds = array<i64: 16, 128>}, {pipeline_mode = #tpu.pipeline_mode<synchronous>, transform_indices = @transform_8, window_bounds = array<i64: 1, 128>}, {transform_indices = @transform_9, window_bounds = array<i64: 2, 128>}]} {
    %c0 = arith.constant 0 : index
    %c0_0 = arith.constant 0 : index
    %0 = vector.load %arg1[%c0, %c0_0] : memref<3x512xf32, #tpu.memory_space<vmem>>, vector<3x512xf32>
    %c0_1 = arith.constant 0 : index
    %c0_2 = arith.constant 0 : index
    %1 = vector.load %arg2[%c0_1, %c0_2] : memref<1x512xf32, #tpu.memory_space<vmem>>, vector<1x512xf32>
    %2 = vector.broadcast %1 : vector<1x512xf32> to vector<3x512xf32>
    %3 = arith.mulf %2, %0 : vector<3x512xf32>
    %c0_3 = arith.constant 0 : index
    %c0_4 = arith.constant 0 : index
    %4 = vector.load %arg3[%c0_3, %c0_4] : memref<3x512xf32, #tpu.memory_space<vmem>>, vector<3x512xf32>
    %5 = arith.addf %3, %4 : vector<3x512xf32>
    %c17_i32 = arith.constant 17 : i32
    %6 = tpu.dynamic_rotate %5 by %c17_i32 dim 1 : vector<3x512xf32>, i32 -> vector<3x512xf32>
    %c0_5 = arith.constant 0 : index
    %c0_6 = arith.constant 0 : index
    %7 = vector.load %arg4[%c0_5, %c0_6] : memref<9x512xf32, #tpu.memory_space<vmem>>, vector<1x512xf32>
    %8 = vector.broadcast %7 : vector<1x512xf32> to vector<3x512xf32>
    %9 = arith.mulf %6, %8 : vector<3x512xf32>
    %10 = arith.truncf %9 : vector<3x512xf32> to vector<3x512xbf16>
    %c16_i32 = arith.constant 16 : i32
    %11 = tpu.dynamic_rotate %5 by %c16_i32 dim 1 : vector<3x512xf32>, i32 -> vector<3x512xf32>
    %c1 = arith.constant 1 : index
    %c0_7 = arith.constant 0 : index
    %12 = vector.load %arg4[%c1, %c0_7] : memref<9x512xf32, #tpu.memory_space<vmem>>, vector<1x512xf32>
    %13 = vector.broadcast %12 : vector<1x512xf32> to vector<3x512xf32>
    %14 = arith.mulf %11, %13 : vector<3x512xf32>
    %15 = arith.truncf %14 : vector<3x512xf32> to vector<3x512xbf16>
    %c15_i32 = arith.constant 15 : i32
    %16 = tpu.dynamic_rotate %5 by %c15_i32 dim 1 : vector<3x512xf32>, i32 -> vector<3x512xf32>
    %c2 = arith.constant 2 : index
    %c0_8 = arith.constant 0 : index
    %17 = vector.load %arg4[%c2, %c0_8] : memref<9x512xf32, #tpu.memory_space<vmem>>, vector<1x512xf32>
    %18 = vector.broadcast %17 : vector<1x512xf32> to vector<3x512xf32>
    %19 = arith.mulf %16, %18 : vector<3x512xf32>
    %20 = arith.truncf %19 : vector<3x512xf32> to vector<3x512xbf16>
    %c1_i32 = arith.constant 1 : i32
    %21 = tpu.dynamic_rotate %5 by %c1_i32 dim 1 : vector<3x512xf32>, i32 -> vector<3x512xf32>
    %c3 = arith.constant 3 : index
    %c0_9 = arith.constant 0 : index
    %22 = vector.load %arg4[%c3, %c0_9] : memref<9x512xf32, #tpu.memory_space<vmem>>, vector<1x512xf32>
    %23 = vector.broadcast %22 : vector<1x512xf32> to vector<3x512xf32>
    %24 = arith.mulf %21, %23 : vector<3x512xf32>
    %25 = arith.truncf %24 : vector<3x512xf32> to vector<3x512xbf16>
    %26 = arith.truncf %5 : vector<3x512xf32> to vector<3x512xbf16>
    %c511_i32 = arith.constant 511 : i32
    %27 = tpu.dynamic_rotate %5 by %c511_i32 dim 1 : vector<3x512xf32>, i32 -> vector<3x512xf32>
    %c5 = arith.constant 5 : index
    %c0_10 = arith.constant 0 : index
    %28 = vector.load %arg4[%c5, %c0_10] : memref<9x512xf32, #tpu.memory_space<vmem>>, vector<1x512xf32>
    %29 = vector.broadcast %28 : vector<1x512xf32> to vector<3x512xf32>
    %30 = arith.mulf %27, %29 : vector<3x512xf32>
    %31 = arith.truncf %30 : vector<3x512xf32> to vector<3x512xbf16>
    %c497_i32 = arith.constant 497 : i32
    %32 = tpu.dynamic_rotate %5 by %c497_i32 dim 1 : vector<3x512xf32>, i32 -> vector<3x512xf32>
    %c6 = arith.constant 6 : index
    %c0_11 = arith.constant 0 : index
    %33 = vector.load %arg4[%c6, %c0_11] : memref<9x512xf32, #tpu.memory_space<vmem>>, vector<1x512xf32>
    %34 = vector.broadcast %33 : vector<1x512xf32> to vector<3x512xf32>
    %35 = arith.mulf %32, %34 : vector<3x512xf32>
    %36 = arith.truncf %35 : vector<3x512xf32> to vector<3x512xbf16>
    %c496_i32 = arith.constant 496 : i32
    %37 = tpu.dynamic_rotate %5 by %c496_i32 dim 1 : vector<3x512xf32>, i32 -> vector<3x512xf32>
    %c7 = arith.constant 7 : index
    %c0_12 = arith.constant 0 : index
    %38 = vector.load %arg4[%c7, %c0_12] : memref<9x512xf32, #tpu.memory_space<vmem>>, vector<1x512xf32>
    %39 = vector.broadcast %38 : vector<1x512xf32> to vector<3x512xf32>
    %40 = arith.mulf %37, %39 : vector<3x512xf32>
    %41 = arith.truncf %40 : vector<3x512xf32> to vector<3x512xbf16>
    %c495_i32 = arith.constant 495 : i32
    %42 = tpu.dynamic_rotate %5 by %c495_i32 dim 1 : vector<3x512xf32>, i32 -> vector<3x512xf32>
    %c8 = arith.constant 8 : index
    %c0_13 = arith.constant 0 : index
    %43 = vector.load %arg4[%c8, %c0_13] : memref<9x512xf32, #tpu.memory_space<vmem>>, vector<1x512xf32>
    %44 = vector.broadcast %43 : vector<1x512xf32> to vector<3x512xf32>
    %45 = arith.mulf %42, %44 : vector<3x512xf32>
    %46 = arith.truncf %45 : vector<3x512xf32> to vector<3x512xbf16>
    %47 = tpu.concatenate %10, %15, %20, %25, %26, %31, %36, %41, %46 in 0 : vector<3x512xbf16>, vector<3x512xbf16>, vector<3x512xbf16>, vector<3x512xbf16>, vector<3x512xbf16>, vector<3x512xbf16>, vector<3x512xbf16>, vector<3x512xbf16>, vector<3x512xbf16> -> vector<27x512xbf16>
    %c0_14 = arith.constant 0 : index
    %c0_15 = arith.constant 0 : index
    %48 = vector.load %arg5[%c0_14, %c0_15] : memref<16x27xbf16, #tpu.memory_space<vmem>>, vector<16x27xbf16>
    %cst = arith.constant dense<0.000000e+00> : vector<16x512xf32>
    %49 = tpu.matmul %48, %47, %cst {dimension_numbers = #tpu.dot_dimension_numbers<[1], [0], [0], [1], [0, 0, 1, 1], [], []>} : vector<16x27xbf16>, vector<27x512xbf16>, vector<16x512xf32> -> vector<16x512xf32>
    %c0_16 = arith.constant 0 : index
    %c0_17 = arith.constant 0 : index
    %50 = vector.load %arg6[%c0_16, %c0_17] : memref<16x1xf32, #tpu.memory_space<vmem>>, vector<16x1xf32>
    %51 = vector.broadcast %50 : vector<16x1xf32> to vector<16x512xf32>
    %52 = arith.addf %49, %51 : vector<16x512xf32>
    %cst_18 = arith.constant 0.000000e+00 : f32
    %53 = vector.broadcast %cst_18 : f32 to vector<16x512xf32>
    %54 = arith.maximumf %52, %53 : vector<16x512xf32>
    %55 = arith.truncf %54 : vector<16x512xf32> to vector<16x512xbf16>
    %c0_19 = arith.constant 0 : index
    %c0_20 = arith.constant 0 : index
    %56 = vector.load %arg7[%c0_19, %c0_20] : memref<512x2xbf16, #tpu.memory_space<vmem>>, vector<512x2xbf16>
    %cst_21 = arith.constant dense<0.000000e+00> : vector<2x16xf32>
    %57 = tpu.matmul %56, %55, %cst_21 {dimension_numbers = #tpu.dot_dimension_numbers<[0], [1], [1], [0], [0, 1, 1, 0], [], []>} : vector<512x2xbf16>, vector<16x512xbf16>, vector<2x16xf32> -> vector<2x16xf32>
    %58 = arith.truncf %57 : vector<2x16xf32> to vector<2x16xbf16>
    %c0_22 = arith.constant 0 : index
    %c0_23 = arith.constant 0 : index
    %59 = vector.load %arg8[%c0_22, %c0_23] : memref<16x128xbf16, #tpu.memory_space<vmem>>, vector<16x128xbf16>
    %cst_24 = arith.constant dense<0.000000e+00> : vector<2x128xf32>
    %60 = tpu.matmul %58, %59, %cst_24 {dimension_numbers = #tpu.dot_dimension_numbers<[1], [0], [0], [1], [0, 0, 1, 1], [], []>} : vector<2x16xbf16>, vector<16x128xbf16>, vector<2x128xf32> -> vector<2x128xf32>
    %c0_25 = arith.constant 0 : index
    %c0_26 = arith.constant 0 : index
    %61 = vector.load %arg9[%c0_25, %c0_26] : memref<1x128xf32, #tpu.memory_space<vmem>>, vector<1x128xf32>
    %62 = vector.broadcast %61 : vector<1x128xf32> to vector<2x128xf32>
    %63 = arith.addf %60, %62 : vector<2x128xf32>
    %c0_27 = arith.constant 0 : index
    %c0_28 = arith.constant 0 : index
    %64 = vector.load %arg10[%c0_27, %c0_28] : memref<2x128xf32, #tpu.memory_space<vmem>>, vector<2x128xf32>
    tpu.vector_store %arg10[%c0_27, %c0_28], %63 {strides = array<i32>} : memref<2x128xf32, #tpu.memory_space<vmem>>, vector<2x128xf32>,
    return
  }
  func.func @transform_0(%arg0: i32) -> (i32, i32) {
    %c0_i32 = arith.constant 0 : i32
    %c0_i32_0 = arith.constant 0 : i32
    return %c0_i32, %arg0 : i32, i32
  }
  func.func @transform_1(%arg0: i32) -> (i32, i32) {
    %c0_i32 = arith.constant 0 : i32
    %c0_i32_0 = arith.constant 0 : i32
    %c0_i32_1 = arith.constant 0 : i32
    return %c0_i32, %c0_i32_0 : i32, i32
  }
  func.func @transform_2(%arg0: i32) -> (i32, i32) {
    %c0_i32 = arith.constant 0 : i32
    %c0_i32_0 = arith.constant 0 : i32
    %c0_i32_1 = arith.constant 0 : i32
    return %c0_i32, %c0_i32_0 : i32, i32
  }
  func.func @transform_3(%arg0: i32) -> (i32, i32) {
    %c0_i32 = arith.constant 0 : i32
    %c0_i32_0 = arith.constant 0 : i32
    %c0_i32_1 = arith.constant 0 : i32
    return %c0_i32, %c0_i32_0 : i32, i32
  }
  func.func @transform_4(%arg0: i32) -> (i32, i32) {
    %c0_i32 = arith.constant 0 : i32
    %c0_i32_0 = arith.constant 0 : i32
    %c0_i32_1 = arith.constant 0 : i32
    return %c0_i32, %c0_i32_0 : i32, i32
  }
  func.func @transform_5(%arg0: i32) -> (i32, i32) {
    %c0_i32 = arith.constant 0 : i32
    %c0_i32_0 = arith.constant 0 : i32
    %c0_i32_1 = arith.constant 0 : i32
    return %c0_i32, %c0_i32_0 : i32, i32
  }
  func.func @transform_6(%arg0: i32) -> (i32, i32) {
    %c0_i32 = arith.constant 0 : i32
    %c0_i32_0 = arith.constant 0 : i32
    %c0_i32_1 = arith.constant 0 : i32
    return %c0_i32, %c0_i32_0 : i32, i32
  }
  func.func @transform_7(%arg0: i32) -> (i32, i32) {
    %c0_i32 = arith.constant 0 : i32
    %c0_i32_0 = arith.constant 0 : i32
    %c0_i32_1 = arith.constant 0 : i32
    return %c0_i32, %c0_i32_0 : i32, i32
  }
  func.func @transform_8(%arg0: i32) -> (i32, i32) {
    %c0_i32 = arith.constant 0 : i32
    %c0_i32_0 = arith.constant 0 : i32
    %c0_i32_1 = arith.constant 0 : i32
    return %c0_i32, %c0_i32_0 : i32, i32
  }
  func.func @transform_9(%arg0: i32) -> (i32, i32) {
    %c0_i32 = arith.constant 0 : i32
    %c0_i32_0 = arith.constant 0 : i32
    return %arg0, %c0_i32 : i32, i32
  }
}

</mosaic_0001>

<llo_original>
// kernel: regression_model_forward.1
$region0: #{regression_model_forward.1}
  #allocation0 [shape = 'u32[]', space=smem, size = 0x4, offset = 0x4, fixed_abs, tag = 'smem constant byte address 0x4 - core index']
  #allocation1 [shape = 'u32[144,128]{1,0:T(1,128)}', space=vmem, size = 0x12000, scoped, tag = 'internal scratch']
  %s0 = inlined_call_operand.vmem [shape: f32[3,512], index: 0, kind: input, shape index: {}]
  %s1 = inlined_call_operand.vmem [shape: f32[1,512], index: 1, kind: input, shape index: {}]
  %s2 = inlined_call_operand.vmem [shape: f32[3,512], index: 2, kind: input, shape index: {}]
  %s3 = inlined_call_operand.vmem [shape: f32[9,512], index: 3, kind: input, shape index: {}]
  %s4 = inlined_call_operand.vmem [shape: bf16[16,27], index: 4, kind: input, shape index: {}]
  %s5 = inlined_call_operand.vmem [shape: f32[16,1], index: 5, kind: input, shape index: {}]
  %s6 = inlined_call_operand.vmem [shape: bf16[512,2], index: 6, kind: input, shape index: {}]
  %s7 = inlined_call_operand.vmem [shape: bf16[16,128], index: 7, kind: input, shape index: {}]
  %s8 = inlined_call_operand.vmem [shape: f32[1,128], index: 8, kind: input, shape index: {}]
  %s9 = inlined_call_operand.hbm [shape: f32[2,128], index: 9, kind: output, shape index: {}]
  %s10 = sld [smem:[#allocation0]]
  $region46: #{regression_model_forward.1} parent=0
    _
  %s12 = ssub.s32 1, %s10
  %s13 = scalar_select 0, %s12, %s10
  $region1: #{regression_model_forward.1} parent=0
    #allocation2 [shape = 'u8[1024]{0}', space=vmem, size = 0x400, scoped, tag = 'output window, operand 0, single buffered']
    #allocation3 [shape = 's32[1]{0}', space=sflag, size = 0x4, scoped, tag = 'scoped memory for regression_model_forward.1']
    %14 = vsyncpa [#allocation3], 0
    // Predicated region
    $region2: #{regression_model_forward.1} parent=1 // pred_check
      _
    $region3: #{regression_model_forward.1} parent=1 // pred_check_branch
      %16 = sbr.rel (0) target = $region5
    $region4: #{regression_model_forward.1} parent=1 // pred_region
      _
    $region5: #{regression_model_forward.1} parent=1 // pred_fallthru
      _
    // Predicated region
    $region6: #{regression_model_forward.1} parent=1 // pred_check
      _
    $region7: #{regression_model_forward.1} parent=1 // pred_check_branch
      %18 = sbr.rel (0) target = $region9
    $region8: #{regression_model_forward.1} parent=1 // pred_region
      _
    $region9: #{regression_model_forward.1} parent=1 // pred_fallthru
      _
    // Predicated region
    $region10: #{regression_model_forward.1} parent=1 // pred_check
      _
    $region11: #{regression_model_forward.1} parent=1 // pred_check_branch
      %20 = sbr.rel (0) target = $region13
    $region12: #{regression_model_forward.1} parent=1 // pred_region
      _
    $region13: #{regression_model_forward.1} parent=1 // pred_fallthru
      _
    // Predicated region
    $region14: #{regression_model_forward.1} parent=1 // pred_check
      _
    $region15: #{regression_model_forward.1} parent=1 // pred_check_branch
      %22 = sbr.rel (0) target = $region17
    $region16: #{regression_model_forward.1} parent=1 // pred_region
      _
    $region17: #{regression_model_forward.1} parent=1 // pred_fallthru
      _
    // Predicated region
    $region18: #{regression_model_forward.1} parent=1 // pred_check
      _
    $region19: #{regression_model_forward.1} parent=1 // pred_check_branch
      %24 = sbr.rel (0) target = $region21
    $region20: #{regression_model_forward.1} parent=1 // pred_region
      _
    $region21: #{regression_model_forward.1} parent=1 // pred_fallthru
      _
    // Predicated region
    $region22: #{regression_model_forward.1} parent=1 // pred_check
      _
    $region23: #{regression_model_forward.1} parent=1 // pred_check_branch
      %26 = sbr.rel (0) target = $region25
    $region24: #{regression_model_forward.1} parent=1 // pred_region
      _
    $region25: #{regression_model_forward.1} parent=1 // pred_fallthru
      _
    // Predicated region
    $region26: #{regression_model_forward.1} parent=1 // pred_check
      _
    $region27: #{regression_model_forward.1} parent=1 // pred_check_branch
      %28 = sbr.rel (0) target = $region29
    $region28: #{regression_model_forward.1} parent=1 // pred_region
      _
    $region29: #{regression_model_forward.1} parent=1 // pred_fallthru
      _
    // Predicated region
    $region30: #{regression_model_forward.1} parent=1 // pred_check
      _
    $region31: #{regression_model_forward.1} parent=1 // pred_check_branch
      %30 = sbr.rel (0) target = $region33
    $region32: #{regression_model_forward.1} parent=1 // pred_region
      _
    $region33: #{regression_model_forward.1} parent=1 // pred_fallthru
      _
    // Predicated region
    $region34: #{regression_model_forward.1} parent=1 // pred_check
      _
    $region35: #{regression_model_forward.1} parent=1 // pred_check_branch
      %32 = sbr.rel (0) target = $region37
    $region36: #{regression_model_forward.1} parent=1 // pred_region
      _
    $region37: #{regression_model_forward.1} parent=1 // pred_fallthru
      _
    %v34 = vld [vmem:[%s0] sm:$0x77]
    %v35 = vld [vmem:[%s0 + $0x8] sm:$0x77]
    %v36 = vld [vmem:[%s1] sm:$0xf]
    %v38 = vlaneseq
    %v39 = vshrl.u32 %v38, 7
    %v40 = vsub.s32 0, %v39
    %v41 = vrot.slane %v36, %v40
    %v42 = vlaneseq
    %v43 = vshrl.u32 %v42, 7
    %v44 = vsub.s32 1, %v43
    %v45 = vrot.slane %v36, %v44
    %v46 = vlaneseq
    %v47 = vshrl.u32 %v46, 7
    %v48 = vsub.s32 2, %v47
    %v49 = vrot.slane %v36, %v48
    %v50 = vlaneseq
    %v51 = vshrl.u32 %v50, 7
    %v52 = vsub.s32 3, %v51
    %v53 = vrot.slane %v36, %v52
    %v60 = vcombine.high %v34, %v34
    %v61 = vcombine.high %v35, %v35
    %v64 = vmul.f32 %v41, %v34
    %v65 = vmul.f32 %v45, %v60
    %v66 = vmul.f32 %v49, %v35
    %v67 = vmul.f32 %v53, %v61
    %v68 = vld [vmem:[%s2] sm:$0x77]
    %v69 = vld [vmem:[%s2 + $0x8] sm:$0x77]
    %v72 = vcombine.high %v68, %v68
    %v73 = vcombine.high %v69, %v69
    %v76 = vadd.f32 %v64, %v68
    %v77 = vadd.f32 %v65, %v72
    %v78 = vadd.f32 %v66, %v69
    %v79 = vadd.f32 %v67, %v73
    %80 = vrot.lane.b32.xlu0 %v76, 17
    %v81 = vpop.permute.xlu0 %80
    %82 = vrot.lane.b32.xlu0 %v77, 17
    %v83 = vpop.permute.xlu0 %82
    %84 = vrot.lane.b32.xlu0 %v78, 17
    %v85 = vpop.permute.xlu0 %84
    %86 = vrot.lane.b32.xlu0 %v79, 17
    %v87 = vpop.permute.xlu0 %86
    %v88 = vlaneseq
    %v89 = vand.u32 %v88, 127
    %vm90 = vcmp.lt.s32.totalorder %v89, 17
    %v91 = vsel %vm90, %v85, %v87
    %v92 = vsel %vm90, %v83, %v85
    %v93 = vsel %vm90, %v81, %v83
    %v94 = vsel %vm90, %v87, %v81
    %v95 = vld [vmem:[%s3] ss:$8 sm:$0xf]
    %v97 = vlaneseq
    %v98 = vshrl.u32 %v97, 7
    %v99 = vsub.s32 0, %v98
    %v100 = vrot.slane %v95, %v99
    %v101 = vlaneseq
    %v102 = vshrl.u32 %v101, 7
    %v103 = vsub.s32 1, %v102
    %v104 = vrot.slane %v95, %v103
    %v105 = vlaneseq
    %v106 = vshrl.u32 %v105, 7
    %v107 = vsub.s32 2, %v106
    %v108 = vrot.slane %v95, %v107
    %v109 = vlaneseq
    %v110 = vshrl.u32 %v109, 7
    %v111 = vsub.s32 3, %v110
    %v112 = vrot.slane %v95, %v111
    %v117 = vmul.f32 %v94, %v100
    %v118 = vmul.f32 %v93, %v104
    %v119 = vmul.f32 %v92, %v108
    %v120 = vmul.f32 %v91, %v112
    %v121 = vpack.c.bf16 %v117, %v117
    %v122 = vpack.c.bf16 %v118, %v118
    %v123 = vpack.c.bf16 %v119, %v119
    %v124 = vpack.c.bf16 %v120, %v120
    %125 = vrot.lane.b32.xlu0 %v76, 16
    %v126 = vpop.permute.xlu0 %125
    %127 = vrot.lane.b32.xlu0 %v77, 16
    %v128 = vpop.permute.xlu0 %127
    %129 = vrot.lane.b32.xlu0 %v78, 16
    %v130 = vpop.permute.xlu0 %129
    %131 = vrot.lane.b32.xlu0 %v79, 16
    %v132 = vpop.permute.xlu0 %131
    %vm133 = vcmp.lt.s32.totalorder %v89, 16
    %v134 = vsel %vm133, %v130, %v132
    %v135 = vsel %vm133, %v128, %v130
    %v136 = vsel %vm133, %v126, %v128
    %v137 = vsel %vm133, %v132, %v126
    %s138 = scalar_lea.vmem %s3, 1
    %v139 = vld [vmem:[%s138] ss:$8 sm:$0xf]
    %v141 = vlaneseq
    %v142 = vshrl.u32 %v141, 7
    %v143 = vsub.s32 0, %v142
    %v144 = vrot.slane %v139, %v143
    %v145 = vlaneseq
    %v146 = vshrl.u32 %v145, 7
    %v147 = vsub.s32 1, %v146
    %v148 = vrot.slane %v139, %v147
    %v149 = vlaneseq
    %v150 = vshrl.u32 %v149, 7
    %v151 = vsub.s32 2, %v150
    %v152 = vrot.slane %v139, %v151
    %v153 = vlaneseq
    %v154 = vshrl.u32 %v153, 7
    %v155 = vsub.s32 3, %v154
    %v156 = vrot.slane %v139, %v155
    %v161 = vmul.f32 %v137, %v144
    %v162 = vmul.f32 %v136, %v148
    %v163 = vmul.f32 %v135, %v152
    %v164 = vmul.f32 %v134, %v156
    %v165 = vpack.c.bf16 %v161, %v161
    %v166 = vpack.c.bf16 %v162, %v162
    %v167 = vpack.c.bf16 %v163, %v163
    %v168 = vpack.c.bf16 %v164, %v164
    %169 = vrot.lane.b32.xlu0 %v76, 15
    %v170 = vpop.permute.xlu0 %169
    %171 = vrot.lane.b32.xlu0 %v77, 15
    %v172 = vpop.permute.xlu0 %171
    %173 = vrot.lane.b32.xlu0 %v78, 15
    %v174 = vpop.permute.xlu0 %173
    %175 = vrot.lane.b32.xlu0 %v79, 15
    %v176 = vpop.permute.xlu0 %175
    %vm177 = vcmp.lt.s32.totalorder %v89, 15
    %v178 = vsel %vm177, %v174, %v176
    %v179 = vsel %vm177, %v172, %v174
    %v180 = vsel %vm177, %v170, %v172
    %v181 = vsel %vm177, %v176, %v170
    %s182 = scalar_lea.vmem %s3, 2
    %v183 = vld [vmem:[%s182] ss:$8 sm:$0xf]
    %v185 = vlaneseq
    %v186 = vshrl.u32 %v185, 7
    %v187 = vsub.s32 0, %v186
    %v188 = vrot.slane %v183, %v187
    %v189 = vlaneseq
    %v190 = vshrl.u32 %v189, 7
    %v191 = vsub.s32 1, %v190
    %v192 = vrot.slane %v183, %v191
    %v193 = vlaneseq
    %v194 = vshrl.u32 %v193, 7
    %v195 = vsub.s32 2, %v194
    %v196 = vrot.slane %v183, %v195
    %v197 = vlaneseq
    %v198 = vshrl.u32 %v197, 7
    %v199 = vsub.s32 3, %v198
    %v200 = vrot.slane %v183, %v199
    %v205 = vmul.f32 %v181, %v188
    %v206 = vmul.f32 %v180, %v192
    %v207 = vmul.f32 %v179, %v196
    %v208 = vmul.f32 %v178, %v200
    %v209 = vpack.c.bf16 %v205, %v205
    %v210 = vpack.c.bf16 %v206, %v206
    %v211 = vpack.c.bf16 %v207, %v207
    %v212 = vpack.c.bf16 %v208, %v208
    %213 = vrot.lane.b32.xlu0 %v76, 1
    %v214 = vpop.permute.xlu0 %213
    %215 = vrot.lane.b32.xlu0 %v77, 1
    %v216 = vpop.permute.xlu0 %215
    %217 = vrot.lane.b32.xlu0 %v78, 1
    %v218 = vpop.permute.xlu0 %217
    %219 = vrot.lane.b32.xlu0 %v79, 1
    %v220 = vpop.permute.xlu0 %219
    %vm221 = vcmp.lt.s32.totalorder %v89, 1
    %v222 = vsel %vm221, %v218, %v220
    %v223 = vsel %vm221, %v216, %v218
    %v224 = vsel %vm221, %v214, %v216
    %v225 = vsel %vm221, %v220, %v214
    %s226 = scalar_lea.vmem %s3, 3
    %v227 = vld [vmem:[%s226] ss:$8 sm:$0xf]
    %v229 = vlaneseq
    %v230 = vshrl.u32 %v229, 7
    %v231 = vsub.s32 0, %v230
    %v232 = vrot.slane %v227, %v231
    %v233 = vlaneseq
    %v234 = vshrl.u32 %v233, 7
    %v235 = vsub.s32 1, %v234
    %v236 = vrot.slane %v227, %v235
    %v237 = vlaneseq
    %v238 = vshrl.u32 %v237, 7
    %v239 = vsub.s32 2, %v238
    %v240 = vrot.slane %v227, %v239
    %v241 = vlaneseq
    %v242 = vshrl.u32 %v241, 7
    %v243 = vsub.s32 3, %v242
    %v244 = vrot.slane %v227, %v243
    %v249 = vmul.f32 %v225, %v232
    %v250 = vmul.f32 %v224, %v236
    %v251 = vmul.f32 %v223, %v240
    %v252 = vmul.f32 %v222, %v244
    %v253 = vpack.c.bf16 %v249, %v249
    %v254 = vpack.c.bf16 %v250, %v250
    %v255 = vpack.c.bf16 %v251, %v251
    %v256 = vpack.c.bf16 %v252, %v252
    %v257 = vpack.c.bf16 %v76, %v76
    %v258 = vpack.c.bf16 %v77, %v77
    %v259 = vpack.c.bf16 %v78, %v78
    %v260 = vpack.c.bf16 %v79, %v79
    %261 = vrot.lane.b32.xlu0 %v76, 127
    %v262 = vpop.permute.xlu0 %261
    %263 = vrot.lane.b32.xlu0 %v77, 127
    %v264 = vpop.permute.xlu0 %263
    %265 = vrot.lane.b32.xlu0 %v78, 127
    %v266 = vpop.permute.xlu0 %265
    %267 = vrot.lane.b32.xlu0 %v79, 127
    %v268 = vpop.permute.xlu0 %267
    %vm269 = vcmp.lt.s32.totalorder %v89, 127
    %v270 = vsel %vm269, %v266, %v268
    %v271 = vsel %vm269, %v264, %v266
    %v272 = vsel %vm269, %v262, %v264
    %v273 = vsel %vm269, %v268, %v262
    %s274 = scalar_lea.vmem %s3, 5
    %v275 = vld [vmem:[%s274] ss:$8 sm:$0xf]
    %v277 = vlaneseq
    %v278 = vshrl.u32 %v277, 7
    %v279 = vsub.s32 0, %v278
    %v280 = vrot.slane %v275, %v279
    %v281 = vlaneseq
    %v282 = vshrl.u32 %v281, 7
    %v283 = vsub.s32 1, %v282
    %v284 = vrot.slane %v275, %v283
    %v285 = vlaneseq
    %v286 = vshrl.u32 %v285, 7
    %v287 = vsub.s32 2, %v286
    %v288 = vrot.slane %v275, %v287
    %v289 = vlaneseq
    %v290 = vshrl.u32 %v289, 7
    %v291 = vsub.s32 3, %v290
    %v292 = vrot.slane %v275, %v291
    %v297 = vmul.f32 %v272, %v280
    %v298 = vmul.f32 %v271, %v284
    %v299 = vmul.f32 %v270, %v288
    %v300 = vmul.f32 %v273, %v292
    %v301 = vpack.c.bf16 %v297, %v297
    %v302 = vpack.c.bf16 %v298, %v298
    %v303 = vpack.c.bf16 %v299, %v299
    %v304 = vpack.c.bf16 %v300, %v300
    %305 = vrot.lane.b32.xlu0 %v76, 113
    %v306 = vpop.permute.xlu0 %305
    %307 = vrot.lane.b32.xlu0 %v77, 113
    %v308 = vpop.permute.xlu0 %307
    %309 = vrot.lane.b32.xlu0 %v78, 113
    %v310 = vpop.permute.xlu0 %309
    %311 = vrot.lane.b32.xlu0 %v79, 113
    %v312 = vpop.permute.xlu0 %311
    %vm313 = vcmp.lt.s32.totalorder %v89, 113
    %v314 = vsel %vm313, %v310, %v312
    %v315 = vsel %vm313, %v308, %v310
    %v316 = vsel %vm313, %v306, %v308
    %v317 = vsel %vm313, %v312, %v306
    %s318 = scalar_lea.vmem %s3, 6
    %v319 = vld [vmem:[%s318] ss:$8 sm:$0xf]
    %v321 = vlaneseq
    %v322 = vshrl.u32 %v321, 7
    %v323 = vsub.s32 0, %v322
    %v324 = vrot.slane %v319, %v323
    %v325 = vlaneseq
    %v326 = vshrl.u32 %v325, 7
    %v327 = vsub.s32 1, %v326
    %v328 = vrot.slane %v319, %v327
    %v329 = vlaneseq
    %v330 = vshrl.u32 %v329, 7
    %v331 = vsub.s32 2, %v330
    %v332 = vrot.slane %v319, %v331
    %v333 = vlaneseq
    %v334 = vshrl.u32 %v333, 7
    %v335 = vsub.s32 3, %v334
    %v336 = vrot.slane %v319, %v335
    %v341 = vmul.f32 %v316, %v324
    %v342 = vmul.f32 %v315, %v328
    %v343 = vmul.f32 %v314, %v332
    %v344 = vmul.f32 %v317, %v336
    %v345 = vpack.c.bf16 %v341, %v341
    %v346 = vpack.c.bf16 %v342, %v342
    %v347 = vpack.c.bf16 %v343, %v343
    %v348 = vpack.c.bf16 %v344, %v344
    %349 = vrot.lane.b32.xlu0 %v76, 112
    %v350 = vpop.permute.xlu0 %349
    %351 = vrot.lane.b32.xlu0 %v77, 112
    %v352 = vpop.permute.xlu0 %351
    %353 = vrot.lane.b32.xlu0 %v78, 112
    %v354 = vpop.permute.xlu0 %353
    %355 = vrot.lane.b32.xlu0 %v79, 112
    %v356 = vpop.permute.xlu0 %355
    %vm357 = vcmp.lt.s32.totalorder %v89, 112
    %v358 = vsel %vm357, %v354, %v356
    %v359 = vsel %vm357, %v352, %v354
    %v360 = vsel %vm357, %v350, %v352
    %v361 = vsel %vm357, %v356, %v350
    %s362 = scalar_lea.vmem %s3, 7
    %v363 = vld [vmem:[%s362] ss:$8 sm:$0xf]
    %v365 = vlaneseq
    %v366 = vshrl.u32 %v365, 7
    %v367 = vsub.s32 0, %v366
    %v368 = vrot.slane %v363, %v367
    %v369 = vlaneseq
    %v370 = vshrl.u32 %v369, 7
    %v371 = vsub.s32 1, %v370
    %v372 = vrot.slane %v363, %v371
    %v373 = vlaneseq
    %v374 = vshrl.u32 %v373, 7
    %v375 = vsub.s32 2, %v374
    %v376 = vrot.slane %v363, %v375
    %v377 = vlaneseq
    %v378 = vshrl.u32 %v377, 7
    %v379 = vsub.s32 3, %v378
    %v380 = vrot.slane %v363, %v379
    %v385 = vmul.f32 %v360, %v368
    %v386 = vmul.f32 %v359, %v372
    %v387 = vmul.f32 %v358, %v376
    %v388 = vmul.f32 %v361, %v380
    %v389 = vpack.c.bf16 %v385, %v385
    %v390 = vpack.c.bf16 %v386, %v386
    %v391 = vpack.c.bf16 %v387, %v387
    %v392 = vpack.c.bf16 %v388, %v388
    %393 = vrot.lane.b32.xlu0 %v76, 111
    %v394 = vpop.permute.xlu0 %393
    %395 = vrot.lane.b32.xlu0 %v77, 111
    %v396 = vpop.permute.xlu0 %395
    %397 = vrot.lane.b32.xlu0 %v78, 111
    %v398 = vpop.permute.xlu0 %397
    %399 = vrot.lane.b32.xlu0 %v79, 111
    %v400 = vpop.permute.xlu0 %399
    %vm401 = vcmp.lt.s32.totalorder %v89, 111
    %v402 = vsel %vm401, %v398, %v400
    %v403 = vsel %vm401, %v396, %v398
    %v404 = vsel %vm401, %v394, %v396
    %v405 = vsel %vm401, %v400, %v394
    %s406 = scalar_lea.vmem %s3, 32
    %v407 = vld [vmem:[%s406] ss:$8 sm:$0xf]
    %v409 = vlaneseq
    %v410 = vshrl.u32 %v409, 7
    %v411 = vsub.s32 0, %v410
    %v412 = vrot.slane %v407, %v411
    %v413 = vlaneseq
    %v414 = vshrl.u32 %v413, 7
    %v415 = vsub.s32 1, %v414
    %v416 = vrot.slane %v407, %v415
    %v417 = vlaneseq
    %v418 = vshrl.u32 %v417, 7
    %v419 = vsub.s32 2, %v418
    %v420 = vrot.slane %v407, %v419
    %v421 = vlaneseq
    %v422 = vshrl.u32 %v421, 7
    %v423 = vsub.s32 3, %v422
    %v424 = vrot.slane %v407, %v423
    %v429 = vmul.f32 %v404, %v412
    %v430 = vmul.f32 %v403, %v416
    %v431 = vmul.f32 %v402, %v420
    %v432 = vmul.f32 %v405, %v424
    %v433 = vpack.c.bf16 %v429, %v429
    %v434 = vpack.c.bf16 %v430, %v430
    %v435 = vpack.c.bf16 %v431, %v431
    %v436 = vpack.c.bf16 %v432, %v432
    %v438 = vshrl.u32 %v165, 16
    %v440 = vrot.slane %v438, 6
    %v441 = vshll.u32 %v165, 16
    %v443 = vrot.slane %v441, 7
    %v444 = vor.u32 %v440, %v443
    %v446 = vshrl.u32 %v166, 16
    %v448 = vrot.slane %v446, 6
    %v449 = vshll.u32 %v166, 16
    %v451 = vrot.slane %v449, 7
    %v452 = vor.u32 %v448, %v451
    %v454 = vshrl.u32 %v167, 16
    %v456 = vrot.slane %v454, 6
    %v457 = vshll.u32 %v167, 16
    %v459 = vrot.slane %v457, 7
    %v460 = vor.u32 %v456, %v459
    %v462 = vshrl.u32 %v168, 16
    %v464 = vrot.slane %v462, 6
    %v465 = vshll.u32 %v168, 16
    %v467 = vrot.slane %v465, 7
    %v468 = vor.u32 %v464, %v467
    %v477 = vrot.slane %v209, 5
    %v478 = vrot.slane %v210, 5
    %v479 = vrot.slane %v211, 5
    %v480 = vrot.slane %v212, 5
    %v482 = vshrl.u32 %v253, 16
    %v484 = vrot.slane %v482, 3
    %v485 = vshll.u32 %v253, 16
    %v487 = vrot.slane %v485, 4
    %v488 = vor.u32 %v484, %v487
    %v490 = vshrl.u32 %v254, 16
    %v492 = vrot.slane %v490, 3
    %v493 = vshll.u32 %v254, 16
    %v495 = vrot.slane %v493, 4
    %v496 = vor.u32 %v492, %v495
    %v498 = vshrl.u32 %v255, 16
    %v500 = vrot.slane %v498, 3
    %v501 = vshll.u32 %v255, 16
    %v503 = vrot.slane %v501, 4
    %v504 = vor.u32 %v500, %v503
    %v506 = vshrl.u32 %v256, 16
    %v508 = vrot.slane %v506, 3
    %v509 = vshll.u32 %v256, 16
    %v511 = vrot.slane %v509, 4
    %v512 = vor.u32 %v508, %v511
    %v521 = vrot.slane %v257, 2
    %v522 = vrot.slane %v258, 2
    %v523 = vrot.slane %v259, 2
    %v524 = vrot.slane %v260, 2
    %v526 = vshll.u32 %v301, 16
    %v528 = vrot.slane %v526, 1
    %v530 = vshll.u32 %v302, 16
    %v532 = vrot.slane %v530, 1
    %v534 = vshll.u32 %v303, 16
    %v536 = vrot.slane %v534, 1
    %v538 = vshll.u32 %v304, 16
    %v540 = vrot.slane %v538, 1
    %v541 = vshrl.u32 %v301, 16
    %v543 = vor.u32 %v541, %v528
    %v544 = vshrl.u32 %v302, 16
    %v546 = vor.u32 %v544, %v532
    %v547 = vshrl.u32 %v303, 16
    %v549 = vor.u32 %v547, %v536
    %v550 = vshrl.u32 %v304, 16
    %v552 = vor.u32 %v550, %v540
    %v561 = vrot.slane %v345, 7
    %v562 = vrot.slane %v346, 7
    %v563 = vrot.slane %v347, 7
    %v564 = vrot.slane %v348, 7
    %v566 = vshrl.u32 %v389, 16
    %v568 = vrot.slane %v566, 5
    %v569 = vshll.u32 %v389, 16
    %v571 = vrot.slane %v569, 6
    %v572 = vor.u32 %v568, %v571
    %v574 = vshrl.u32 %v390, 16
    %v576 = vrot.slane %v574, 5
    %v577 = vshll.u32 %v390, 16
    %v579 = vrot.slane %v577, 6
    %v580 = vor.u32 %v576, %v579
    %v582 = vshrl.u32 %v391, 16
    %v584 = vrot.slane %v582, 5
    %v585 = vshll.u32 %v391, 16
    %v587 = vrot.slane %v585, 6
    %v588 = vor.u32 %v584, %v587
    %v590 = vshrl.u32 %v392, 16
    %v592 = vrot.slane %v590, 5
    %v593 = vshll.u32 %v392, 16
    %v595 = vrot.slane %v593, 6
    %v596 = vor.u32 %v592, %v595
    %v605 = vrot.slane %v433, 4
    %v606 = vrot.slane %v434, 4
    %v607 = vrot.slane %v435, 4
    %v608 = vrot.slane %v436, 4
    %vm609 = vcmask 1041408
    %vm610 = vsmask.f32 1280
    %vm611 = vmand %vm609, %vm610
    %v612 = vsel %vm611, %v121, %v444
    %v613 = vsel %vm611, %v122, %v452
    %v614 = vsel %vm611, %v123, %v460
    %v615 = vsel %vm611, %v124, %v468
    %vm616 = vcmask 1042432
    %v619 = vsel %vm616, %v612, %v477
    %v623 = vsel %vm616, %v613, %v478
    %v627 = vsel %vm616, %v614, %v479
    %v631 = vsel %vm616, %v615, %v480
    %vm633 = vcmask 1044480
    %vm634 = vsmask.f32 4352
    %vm635 = vmand %vm633, %vm634
    %v636 = vsel %vm635, %v619, %v488
    %v637 = vsel %vm635, %v623, %v496
    %v638 = vsel %vm635, %v627, %v504
    %v639 = vsel %vm635, %v631, %v512
    %vm640 = vcmask 1045504
    %v643 = vsel %vm640, %v636, %v521
    %v647 = vsel %vm640, %v637, %v522
    %v651 = vsel %vm640, %v638, %v523
    %v655 = vsel %vm640, %v639, %v524
    %vm657 = vcmask 1047552
    %vm658 = vsmask.f32 7424
    %vm659 = vmand %vm657, %vm658
    %v660 = vsel %vm659, %v643, %v528
    %v661 = vsel %vm659, %v647, %v532
    %v662 = vsel %vm659, %v651, %v536
    %v663 = vsel %vm659, %v655, %v540
    %vm664 = vcmask 1040384
    %v667 = vsel %vm664, %v543, %v561
    %v671 = vsel %vm664, %v546, %v562
    %v675 = vsel %vm664, %v549, %v563
    %v679 = vsel %vm664, %v552, %v564
    %vm681 = vcmask 1042432
    %vm682 = vsmask.f32 2304
    %vm683 = vmand %vm681, %vm682
    %v684 = vsel %vm683, %v667, %v572
    %v685 = vsel %vm683, %v671, %v580
    %v686 = vsel %vm683, %v675, %v588
    %v687 = vsel %vm683, %v679, %v596
    %vm688 = vcmask 1043456
    %v691 = vsel %vm688, %v684, %v605
    %v694 = vsel %vm688, %v685, %v606
    %v697 = vsel %vm688, %v686, %v607
    %v700 = vsel %vm688, %v687, %v608
    %v701 = vld [vmem:[%s4] sm:$0xf]
    %v702 = vld [vmem:[%s4 + $0x4] sm:$0xf]
    %v703 = vld [vmem:[%s5] sm:$0xff]
    %v704 = vld [vmem:[%s5 + $0x8] sm:$0xff]
    %706 = vset.pattern.permute.xlu0 0
    %707 = vperm.xlu0 %706, %v703
    %v708 = vpop.permute.xlu0 %707
    %711 = vset.pattern.permute.xlu0 0
    %712 = vperm.xlu0 %711, %v704
    %v713 = vpop.permute.xlu0 %712
    %v717 = vunpack.c.l.b16 %v701
    %v718 = vunpack.c.l.b16 %v702
    %v719 = vpack.c.b16 %v718, %v717
    %vm720 = vcmask 220160
    %v722 = vsel %vm720, %v719, 0
    %vm724 = vcmask 1044480
    %v725 = vsel %vm724, 4294967295, 65535
    %v726 = vsel %vm640, %v725, 0
    %v727 = vand.u32 %v691, %v726
    %v729 = vand.u32 %v694, %v726
    %v731 = vand.u32 %v697, %v726
    %v733 = vand.u32 %v700, %v726
    %735 = vmatprep.subr.bf16.mxu0 %v661
    %736 = vmatpush1.bf16.msra.mxu0 %v660
    %737 = vmatprep.subr.bf16.mxu0 %v729
    %738 = vmatpush1.bf16.msra.mxu0 %v727
    %739 = vmatprep.subr.bf16.mxu0 0
    %740 = vmatpush1.bf16.msra.mxu0 0
    %741 = vmatprep.subr.bf16.mxu0 0
    %742 = vmatpush1.bf16.msra.mxu0 0
    %743 = vmatprep.subr.bf16.mxu0 0
    %744 = vmatpush1.bf16.msra.mxu0 0
    %745 = vmatprep.subr.bf16.mxu0 0
    %746 = vmatpush1.bf16.msra.mxu0 0
    %747 = vmatprep.subr.bf16.mxu0 0
    %748 = vmatpush1.bf16.msra.mxu0 0
    %749 = vmatprep.subr.bf16.mxu0 0
    %750 = vmatpush1.bf16.msra.mxu0 0
    %751 = vmatprep.subr.bf16.mxu0 0
    %752 = vmatpush1.bf16.msra.mxu0 0
    %753 = vmatprep.subr.bf16.mxu0 0
    %754 = vmatpush1.bf16.msra.mxu0 0
    %755 = vmatprep.subr.bf16.mxu0 0
    %756 = vmatpush1.bf16.msra.mxu0 0
    %757 = vmatprep.subr.bf16.mxu0 0
    %758 = vmatpush1.bf16.msra.mxu0 0
    %759 = vmatprep.subr.bf16.mxu0 0
    %760 = vmatpush1.bf16.msra.mxu0 0
    %761 = vmatprep.subr.bf16.mxu0 0
    %762 = vmatpush1.bf16.msra.mxu0 0
    %763 = vmatprep.subr.bf16.mxu0 0
    %764 = vmatpush1.bf16.msra.mxu0 0
    %765 = vmatprep.subr.bf16.mxu0 0
    %766 = vmatpush1.bf16.msra.mxu0 0
    %767 = vmatprep.mubr.bf16.mxu0 0
    %768 = vmatmul.mubr.bf16.gmra.mrb[0].mxu0 %v722
    %v769 = vpop.f32.mrb[0].mxu0
    %v770 = vadd.f32 %v708, %v769
    %v771 = vpop.f32.mrb[0].mxu0
    %v772 = vadd.f32 %v708, %v771
    %v773 = vpop.f32.mrb[0].mxu0
    %v774 = vadd.f32 %v713, %v773
    %v775 = vpop.f32.mrb[0].mxu0
    %v776 = vadd.f32 %v713, %v775
    %777 = vdwg.mxu0
    %778 = vmatprep.subr.bf16.mxu0 %v663
    %779 = vmatpush1.bf16.msra.mxu0 %v662
    %780 = vmatprep.subr.bf16.mxu0 %v733
    %781 = vmatpush1.bf16.msra.mxu0 %v731
    %782 = vmatprep.subr.bf16.mxu0 0
    %783 = vmatpush1.bf16.msra.mxu0 0
    %784 = vmatprep.subr.bf16.mxu0 0
    %785 = vmatpush1.bf16.msra.mxu0 0
    %786 = vmatprep.subr.bf16.mxu0 0
    %787 = vmatpush1.bf16.msra.mxu0 0
    %788 = vmatprep.subr.bf16.mxu0 0
    %789 = vmatpush1.bf16.msra.mxu0 0
    %790 = vmatprep.subr.bf16.mxu0 0
    %791 = vmatpush1.bf16.msra.mxu0 0
    %792 = vmatprep.subr.bf16.mxu0 0
    %793 = vmatpush1.bf16.msra.mxu0 0
    %794 = vmatprep.subr.bf16.mxu0 0
    %795 = vmatpush1.bf16.msra.mxu0 0
    %796 = vmatprep.subr.bf16.mxu0 0
    %797 = vmatpush1.bf16.msra.mxu0 0
    %798 = vmatprep.subr.bf16.mxu0 0
    %799 = vmatpush1.bf16.msra.mxu0 0
    %800 = vmatprep.subr.bf16.mxu0 0
    %801 = vmatpush1.bf16.msra.mxu0 0
    %802 = vmatprep.subr.bf16.mxu0 0
    %803 = vmatpush1.bf16.msra.mxu0 0
    %804 = vmatprep.subr.bf16.mxu0 0
    %805 = vmatpush1.bf16.msra.mxu0 0
    %806 = vmatprep.subr.bf16.mxu0 0
    %807 = vmatpush1.bf16.msra.mxu0 0
    %808 = vmatprep.subr.bf16.mxu0 0
    %809 = vmatpush1.bf16.msra.mxu0 0
    %810 = vmatprep.mubr.bf16.mxu0 0
    %811 = vmatmul.mubr.bf16.gmra.mrb[0].mxu0 %v722
    %v812 = vpop.f32.mrb[0].mxu0
    %v813 = vadd.f32 %v708, %v812
    %v814 = vpop.f32.mrb[0].mxu0
    %v815 = vadd.f32 %v708, %v814
    %v816 = vpop.f32.mrb[0].mxu0
    %v817 = vadd.f32 %v713, %v816
    %v818 = vpop.f32.mrb[0].mxu0
    %v819 = vadd.f32 %v713, %v818
    %820 = vdwg.mxu0
    %v821 = vmax.f32 %v770, 0.0
    %v822 = vmax.f32 %v772, 0.0
    %v823 = vmax.f32 %v813, 0.0
    %v824 = vmax.f32 %v815, 0.0
    %v825 = vmax.f32 %v774, 0.0
    %v826 = vmax.f32 %v776, 0.0
    %v827 = vmax.f32 %v817, 0.0
    %v828 = vmax.f32 %v819, 0.0
    %v829 = vpack.c.bf16 %v825, %v821
    %v830 = vpack.c.bf16 %v826, %v822
    %v831 = vpack.c.bf16 %v827, %v823
    %v832 = vpack.c.bf16 %v828, %v824
    %v833 = vld [vmem:[%s6] sm:$0xf]
    %v834 = vld [vmem:[%s6 + $0x4] sm:$0xf]
    %v835 = vld [vmem:[%s6 + $0x8] sm:$0xf]
    %v836 = vld [vmem:[%s6 + $0xc] sm:$0xf]
    %v837 = vld [vmem:[%s6 + $0x10] sm:$0xf]
    %v838 = vld [vmem:[%s6 + $0x14] sm:$0xf]
    %v839 = vld [vmem:[%s6 + $0x18] sm:$0xf]
    %v840 = vld [vmem:[%s6 + $0x1c] sm:$0xf]
    %v841 = vld [vmem:[%s6 + $0x20] sm:$0xf]
    %v842 = vld [vmem:[%s6 + $0x24] sm:$0xf]
    %v843 = vld [vmem:[%s6 + $0x28] sm:$0xf]
    %v844 = vld [vmem:[%s6 + $0x2c] sm:$0xf]
    %v845 = vld [vmem:[%s6 + $0x30] sm:$0xf]
    %v846 = vld [vmem:[%s6 + $0x34] sm:$0xf]
    %v847 = vld [vmem:[%s6 + $0x38] sm:$0xf]
    %v848 = vld [vmem:[%s6 + $0x3c] sm:$0xf]
    %v849 = vld [vmem:[%s6 + $0x40] sm:$0xf]
    %v850 = vld [vmem:[%s6 + $0x44] sm:$0xf]
    %v851 = vld [vmem:[%s6 + $0x48] sm:$0xf]
    %v852 = vld [vmem:[%s6 + $0x4c] sm:$0xf]
    %v853 = vld [vmem:[%s6 + $0x50] sm:$0xf]
    %v854 = vld [vmem:[%s6 + $0x54] sm:$0xf]
    %v855 = vld [vmem:[%s6 + $0x58] sm:$0xf]
    %v856 = vld [vmem:[%s6 + $0x5c] sm:$0xf]
    %v857 = vld [vmem:[%s6 + $0x60] sm:$0xf]
    %v858 = vld [vmem:[%s6 + $0x64] sm:$0xf]
    %v859 = vld [vmem:[%s6 + $0x68] sm:$0xf]
    %v860 = vld [vmem:[%s6 + $0x6c] sm:$0xf]
    %v861 = vld [vmem:[%s6 + $0x70] sm:$0xf]
    %v862 = vld [vmem:[%s6 + $0x74] sm:$0xf]
    %v863 = vld [vmem:[%s6 + $0x78] sm:$0xf]
    %v864 = vld [vmem:[%s6 + $0x7c] sm:$0xf]
    %v865 = vld [vmem:[%s6 + $0x80] sm:$0xf]
    %v866 = vld [vmem:[%s6 + $0x84] sm:$0xf]
    %v867 = vld [vmem:[%s6 + $0x88] sm:$0xf]
    %v868 = vld [vmem:[%s6 + $0x8c] sm:$0xf]
    %v869 = vld [vmem:[%s6 + $0x90] sm:$0xf]
    %v870 = vld [vmem:[%s6 + $0x94] sm:$0xf]
    %v871 = vld [vmem:[%s6 + $0x98] sm:$0xf]
    %v872 = vld [vmem:[%s6 + $0x9c] sm:$0xf]
    %v873 = vld [vmem:[%s6 + $0xa0] sm:$0xf]
    %v874 = vld [vmem:[%s6 + $0xa4] sm:$0xf]
    %v875 = vld [vmem:[%s6 + $0xa8] sm:$0xf]
    %v876 = vld [vmem:[%s6 + $0xac] sm:$0xf]
    %v877 = vld [vmem:[%s6 + $0xb0] sm:$0xf]
    %v878 = vld [vmem:[%s6 + $0xb4] sm:$0xf]
    %v879 = vld [vmem:[%s6 + $0xb8] sm:$0xf]
    %v880 = vld [vmem:[%s6 + $0xbc] sm:$0xf]
    %v881 = vld [vmem:[%s6 + $0xc0] sm:$0xf]
    %v882 = vld [vmem:[%s6 + $0xc4] sm:$0xf]
    %v883 = vld [vmem:[%s6 + $0xc8] sm:$0xf]
    %v884 = vld [vmem:[%s6 + $0xcc] sm:$0xf]
    %v885 = vld [vmem:[%s6 + $0xd0] sm:$0xf]
    %v886 = vld [vmem:[%s6 + $0xd4] sm:$0xf]
    %v887 = vld [vmem:[%s6 + $0xd8] sm:$0xf]
    %v888 = vld [vmem:[%s6 + $0xdc] sm:$0xf]
    %v889 = vld [vmem:[%s6 + $0xe0] sm:$0xf]
    %v890 = vld [vmem:[%s6 + $0xe4] sm:$0xf]
    %v891 = vld [vmem:[%s6 + $0xe8] sm:$0xf]
    %v892 = vld [vmem:[%s6 + $0xec] sm:$0xf]
    %v893 = vld [vmem:[%s6 + $0xf0] sm:$0xf]
    %v894 = vld [vmem:[%s6 + $0xf4] sm:$0xf]
    %v895 = vld [vmem:[%s6 + $0xf8] sm:$0xf]
    %v896 = vld [vmem:[%s6 + $0xfc] sm:$0xf]
    %v961 = vunpack.c.l.b16 %v833
    %v962 = vunpack.c.l.b16 %v834
    %v963 = vunpack.c.l.b16 %v835
    %v964 = vunpack.c.l.b16 %v836
    %v965 = vunpack.c.l.b16 %v837
    %v966 = vunpack.c.l.b16 %v838
    %v967 = vunpack.c.l.b16 %v839
    %v968 = vunpack.c.l.b16 %v840
    %v969 = vunpack.c.l.b16 %v841
    %v970 = vunpack.c.l.b16 %v842
    %v971 = vunpack.c.l.b16 %v843
    %v972 = vunpack.c.l.b16 %v844
    %v973 = vunpack.c.l.b16 %v845
    %v974 = vunpack.c.l.b16 %v846
    %v975 = vunpack.c.l.b16 %v847
    %v976 = vunpack.c.l.b16 %v848
    %v977 = vunpack.c.l.b16 %v849
    %v978 = vunpack.c.l.b16 %v850
    %v979 = vunpack.c.l.b16 %v851
    %v980 = vunpack.c.l.b16 %v852
    %v981 = vunpack.c.l.b16 %v853
    %v982 = vunpack.c.l.b16 %v854
    %v983 = vunpack.c.l.b16 %v855
    %v984 = vunpack.c.l.b16 %v856
    %v985 = vunpack.c.l.b16 %v857
    %v986 = vunpack.c.l.b16 %v858
    %v987 = vunpack.c.l.b16 %v859
    %v988 = vunpack.c.l.b16 %v860
    %v989 = vunpack.c.l.b16 %v861
    %v990 = vunpack.c.l.b16 %v862
    %v991 = vunpack.c.l.b16 %v863
    %v992 = vunpack.c.l.b16 %v864
    %v993 = vunpack.c.l.b16 %v865
    %v994 = vunpack.c.l.b16 %v866
    %v995 = vunpack.c.l.b16 %v867
    %v996 = vunpack.c.l.b16 %v868
    %v997 = vunpack.c.l.b16 %v869
    %v998 = vunpack.c.l.b16 %v870
    %v999 = vunpack.c.l.b16 %v871
    %v1000 = vunpack.c.l.b16 %v872
    %v1001 = vunpack.c.l.b16 %v873
    %v1002 = vunpack.c.l.b16 %v874
    %v1003 = vunpack.c.l.b16 %v875
    %v1004 = vunpack.c.l.b16 %v876
    %v1005 = vunpack.c.l.b16 %v877
    %v1006 = vunpack.c.l.b16 %v878
    %v1007 = vunpack.c.l.b16 %v879
    %v1008 = vunpack.c.l.b16 %v880
    %v1009 = vunpack.c.l.b16 %v881
    %v1010 = vunpack.c.l.b16 %v882
    %v1011 = vunpack.c.l.b16 %v883
    %v1012 = vunpack.c.l.b16 %v884
    %v1013 = vunpack.c.l.b16 %v885
    %v1014 = vunpack.c.l.b16 %v886
    %v1015 = vunpack.c.l.b16 %v887
    %v1016 = vunpack.c.l.b16 %v888
    %v1017 = vunpack.c.l.b16 %v889
    %v1018 = vunpack.c.l.b16 %v890
    %v1019 = vunpack.c.l.b16 %v891
    %v1020 = vunpack.c.l.b16 %v892
    %v1021 = vunpack.c.l.b16 %v893
    %v1022 = vunpack.c.l.b16 %v894
    %v1023 = vunpack.c.l.b16 %v895
    %v1024 = vunpack.c.l.b16 %v896
    %v1025 = vpack.c.b16 %v962, %v961
    %v1026 = vpack.c.b16 %v964, %v963
    %v1027 = vpack.c.b16 %v966, %v965
    %v1028 = vpack.c.b16 %v968, %v967
    %v1029 = vpack.c.b16 %v970, %v969
    %v1030 = vpack.c.b16 %v972, %v971
    %v1031 = vpack.c.b16 %v974, %v973
    %v1032 = vpack.c.b16 %v976, %v975
    %v1033 = vpack.c.b16 %v978, %v977
    %v1034 = vpack.c.b16 %v980, %v979
    %v1035 = vpack.c.b16 %v982, %v981
    %v1036 = vpack.c.b16 %v984, %v983
    %v1037 = vpack.c.b16 %v986, %v985
    %v1038 = vpack.c.b16 %v988, %v987
    %v1039 = vpack.c.b16 %v990, %v989
    %v1040 = vpack.c.b16 %v992, %v991
    %v1041 = vpack.c.b16 %v994, %v993
    %v1042 = vpack.c.b16 %v996, %v995
    %v1043 = vpack.c.b16 %v998, %v997
    %v1044 = vpack.c.b16 %v1000, %v999
    %v1045 = vpack.c.b16 %v1002, %v1001
    %v1046 = vpack.c.b16 %v1004, %v1003
    %v1047 = vpack.c.b16 %v1006, %v1005
    %v1048 = vpack.c.b16 %v1008, %v1007
    %v1049 = vpack.c.b16 %v1010, %v1009
    %v1050 = vpack.c.b16 %v1012, %v1011
    %v1051 = vpack.c.b16 %v1014, %v1013
    %v1052 = vpack.c.b16 %v1016, %v1015
    %v1053 = vpack.c.b16 %v1018, %v1017
    %v1054 = vpack.c.b16 %v1020, %v1019
    %v1055 = vpack.c.b16 %v1022, %v1021
    %v1056 = vpack.c.b16 %v1024, %v1023
    %1089 = vxpose.xlu0.c.b16.start [1/8] %v1025, 128
    %1090 = vxpose.xlu0.c.b16.cont [2/8] %v1026, 128
    %1091 = vxpose.xlu0.c.b16.cont [3/8] %v1027, 128
    %1092 = vxpose.xlu0.c.b16.cont [4/8] %v1028, 128
    %1093 = vxpose.xlu0.c.b16.cont [5/8] %v1029, 128
    %1094 = vxpose.xlu0.c.b16.cont [6/8] %v1030, 128
    %1095 = vxpose.xlu0.c.b16.cont [7/8] %v1031, 128
    %1096 = vxpose.xlu0.c.b16.end [8/8] %v1032, 128
    %v1097 = vpop.trf.xlu0
    %v1098 = vpop.trf.xlu0
    %v1099 = vpop.trf.xlu0
    %v1100 = vpop.trf.xlu0
    %v1101 = vpop.trf.xlu0
    %v1102 = vpop.trf.xlu0
    %v1103 = vpop.trf.xlu0
    %v1104 = vpop.trf.xlu0
    %1105 = vxpose.xlu0.c.b16.start [1/8] %v1033, 128
    %1106 = vxpose.xlu0.c.b16.cont [2/8] %v1034, 128
    %1107 = vxpose.xlu0.c.b16.cont [3/8] %v1035, 128
    %1108 = vxpose.xlu0.c.b16.cont [4/8] %v1036, 128
    %1109 = vxpose.xlu0.c.b16.cont [5/8] %v1037, 128
    %1110 = vxpose.xlu0.c.b16.cont [6/8] %v1038, 128
    %1111 = vxpose.xlu0.c.b16.cont [7/8] %v1039, 128
    %1112 = vxpose.xlu0.c.b16.end [8/8] %v1040, 128
    %v1113 = vpop.trf.xlu0
    %v1114 = vpop.trf.xlu0
    %v1115 = vpop.trf.xlu0
    %v1116 = vpop.trf.xlu0
    %v1117 = vpop.trf.xlu0
    %v1118 = vpop.trf.xlu0
    %v1119 = vpop.trf.xlu0
    %v1120 = vpop.trf.xlu0
    %1121 = vxpose.xlu0.c.b16.start [1/8] %v1041, 128
    %1122 = vxpose.xlu0.c.b16.cont [2/8] %v1042, 128
    %1123 = vxpose.xlu0.c.b16.cont [3/8] %v1043, 128
    %1124 = vxpose.xlu0.c.b16.cont [4/8] %v1044, 128
    %1125 = vxpose.xlu0.c.b16.cont [5/8] %v1045, 128
    %1126 = vxpose.xlu0.c.b16.cont [6/8] %v1046, 128
    %1127 = vxpose.xlu0.c.b16.cont [7/8] %v1047, 128
    %1128 = vxpose.xlu0.c.b16.end [8/8] %v1048, 128
    %v1129 = vpop.trf.xlu0
    %v1130 = vpop.trf.xlu0
    %v1131 = vpop.trf.xlu0
    %v1132 = vpop.trf.xlu0
    %v1133 = vpop.trf.xlu0
    %v1134 = vpop.trf.xlu0
    %v1135 = vpop.trf.xlu0
    %v1136 = vpop.trf.xlu0
    %1137 = vxpose.xlu0.c.b16.start [1/8] %v1049, 128
    %1138 = vxpose.xlu0.c.b16.cont [2/8] %v1050, 128
    %1139 = vxpose.xlu0.c.b16.cont [3/8] %v1051, 128
    %1140 = vxpose.xlu0.c.b16.cont [4/8] %v1052, 128
    %1141 = vxpose.xlu0.c.b16.cont [5/8] %v1053, 128
    %1142 = vxpose.xlu0.c.b16.cont [6/8] %v1054, 128
    %1143 = vxpose.xlu0.c.b16.cont [7/8] %v1055, 128
    %1144 = vxpose.xlu0.c.b16.end [8/8] %v1056, 128
    %v1145 = vpop.trf.xlu0
    %v1146 = vpop.trf.xlu0
    %v1147 = vpop.trf.xlu0
    %v1148 = vpop.trf.xlu0
    %v1149 = vpop.trf.xlu0
    %v1150 = vpop.trf.xlu0
    %v1151 = vpop.trf.xlu0
    %v1152 = vpop.trf.xlu0
    %1153 = vmatprep.subr.bf16.mxu0 %v830
    %1154 = vmatpush1.bf16.xpose.msra.mxu0 %v829
    %1155 = vmatprep.subr.bf16.mxu0 0
    %1156 = vmatpush1.bf16.xpose.msra.mxu0 0
    %1157 = vmatprep.subr.bf16.mxu0 0
    %1158 = vmatpush1.bf16.xpose.msra.mxu0 0
    %1159 = vmatprep.subr.bf16.mxu0 0
    %1160 = vmatpush1.bf16.xpose.msra.mxu0 0
    %1161 = vmatprep.subr.bf16.mxu0 0
    %1162 = vmatpush1.bf16.xpose.msra.mxu0 0
    %1163 = vmatprep.subr.bf16.mxu0 0
    %1164 = vmatpush1.bf16.xpose.msra.mxu0 0
    %1165 = vmatprep.subr.bf16.mxu0 0
    %1166 = vmatpush1.bf16.xpose.msra.mxu0 0
    %1167 = vmatprep.subr.bf16.mxu0 0
    %1168 = vmatpush1.bf16.xpose.msra.mxu0 0
    %1169 = vmatprep.subr.bf16.mxu0 0
    %1170 = vmatpush1.bf16.xpose.msra.mxu0 0
    %1171 = vmatprep.subr.bf16.mxu0 0
    %1172 = vmatpush1.bf16.xpose.msra.mxu0 0
    %1173 = vmatprep.subr.bf16.mxu0 0
    %1174 = vmatpush1.bf16.xpose.msra.mxu0 0
    %1175 = vmatprep.subr.bf16.mxu0 0
    %1176 = vmatpush1.bf16.xpose.msra.mxu0 0
    %1177 = vmatprep.subr.bf16.mxu0 0
    %1178 = vmatpush1.bf16.xpose.msra.mxu0 0
    %1179 = vmatprep.subr.bf16.mxu0 0
    %1180 = vmatpush1.bf16.xpose.msra.mxu0 0
    %1181 = vmatprep.subr.bf16.mxu0 0
    %1182 = vmatpush1.bf16.xpose.msra.mxu0 0
    %1183 = vmatprep.subr.bf16.mxu0 0
    %1184 = vmatpush1.bf16.xpose.msra.mxu0 0
    %1185 = vmatprep.mubr.bf16.mxu0 %v1113
    %1186 = vmatmul.mubr.bf16.gmra.mrb[0].mxu0 %v1097
    %v1187 = vpop.f32.mrb[0].mxu0
    %v1188 = vadd.f32 0.0, %v1187
    %v1189 = vpop.f32.mrb[0].mxu0
    %v1190 = vpop.f32.mrb[0].mxu0
    %v1191 = vpop.f32.mrb[0].mxu0
    %1192 = vdwg.mxu0
    %1193 = vmatprep.subr.bf16.mxu0 %v832
    %1194 = vmatpush1.bf16.xpose.msra.mxu0 %v831
    %1195 = vmatprep.subr.bf16.mxu0 0
    %1196 = vmatpush1.bf16.xpose.msra.mxu0 0
    %1197 = vmatprep.subr.bf16.mxu0 0
    %1198 = vmatpush1.bf16.xpose.msra.mxu0 0
    %1199 = vmatprep.subr.bf16.mxu0 0
    %1200 = vmatpush1.bf16.xpose.msra.mxu0 0
    %1201 = vmatprep.subr.bf16.mxu0 0
    %1202 = vmatpush1.bf16.xpose.msra.mxu0 0
    %1203 = vmatprep.subr.bf16.mxu0 0
    %1204 = vmatpush1.bf16.xpose.msra.mxu0 0
    %1205 = vmatprep.subr.bf16.mxu0 0
    %1206 = vmatpush1.bf16.xpose.msra.mxu0 0
    %1207 = vmatprep.subr.bf16.mxu0 0
    %1208 = vmatpush1.bf16.xpose.msra.mxu0 0
    %1209 = vmatprep.subr.bf16.mxu0 0
    %1210 = vmatpush1.bf16.xpose.msra.mxu0 0
    %1211 = vmatprep.subr.bf16.mxu0 0
    %1212 = vmatpush1.bf16.xpose.msra.mxu0 0
    %1213 = vmatprep.subr.bf16.mxu0 0
    %1214 = vmatpush1.bf16.xpose.msra.mxu0 0
    %1215 = vmatprep.subr.bf16.mxu0 0
    %1216 = vmatpush1.bf16.xpose.msra.mxu0 0
    %1217 = vmatprep.subr.bf16.mxu0 0
    %1218 = vmatpush1.bf16.xpose.msra.mxu0 0
    %1219 = vmatprep.subr.bf16.mxu0 0
    %1220 = vmatpush1.bf16.xpose.msra.mxu0 0
    %1221 = vmatprep.subr.bf16.mxu0 0
    %1222 = vmatpush1.bf16.xpose.msra.mxu0 0
    %1223 = vmatprep.subr.bf16.mxu0 0
    %1224 = vmatpush1.bf16.xpose.msra.mxu0 0
    %1225 = vmatprep.mubr.bf16.mxu0 %v1145
    %1226 = vmatmul.mubr.bf16.gmra.mrb[0].mxu0 %v1129
    %v1227 = vpop.f32.mrb[0].mxu0
    %v1228 = vadd.f32 %v1188, %v1227
    %v1229 = vpop.f32.mrb[0].mxu0
    %v1230 = vpop.f32.mrb[0].mxu0
    %v1231 = vpop.f32.mrb[0].mxu0
    %1232 = vdwg.mxu0
    %v1233 = vpack.c.bf16 %v1228, %v1228
    %v1234 = vld [vmem:[%s7] sm:$0xf]
    %v1235 = vld [vmem:[%s7 + $0x4] sm:$0xf]
    %v1236 = vld [vmem:[%s8] sm:$0x1]
    %v1238 = vlaneseq
    %v1239 = vshrl.u32 %v1238, 7
    %v1240 = vsub.s32 0, %v1239
    %v1241 = vrot.slane %v1236, %v1240
    %v1245 = vunpack.c.l.b16 %v1234
    %v1246 = vunpack.c.l.b16 %v1235
    %v1247 = vpack.c.b16 %v1246, %v1245
    %vm1249 = vcmask 130048
    %v1251 = vsel %vm1249, %v1233, 0
    %1253 = vmatprep.subr.bf16.mxu0 0
    %1254 = vmatpush1.bf16.msra.mxu0 %v1247
    %1255 = vmatprep.subr.bf16.mxu0 0
    %1256 = vmatpush1.bf16.msra.mxu0 0
    %1257 = vmatprep.subr.bf16.mxu0 0
    %1258 = vmatpush1.bf16.msra.mxu0 0
    %1259 = vmatprep.subr.bf16.mxu0 0
    %1260 = vmatpush1.bf16.msra.mxu0 0
    %1261 = vmatprep.subr.bf16.mxu0 0
    %1262 = vmatpush1.bf16.msra.mxu0 0
    %1263 = vmatprep.subr.bf16.mxu0 0
    %1264 = vmatpush1.bf16.msra.mxu0 0
    %1265 = vmatprep.subr.bf16.mxu0 0
    %1266 = vmatpush1.bf16.msra.mxu0 0
    %1267 = vmatprep.subr.bf16.mxu0 0
    %1268 = vmatpush1.bf16.msra.mxu0 0
    %1269 = vmatprep.subr.bf16.mxu0 0
    %1270 = vmatpush1.bf16.msra.mxu0 0
    %1271 = vmatprep.subr.bf16.mxu0 0
    %1272 = vmatpush1.bf16.msra.mxu0 0
    %1273 = vmatprep.subr.bf16.mxu0 0
    %1274 = vmatpush1.bf16.msra.mxu0 0
    %1275 = vmatprep.subr.bf16.mxu0 0
    %1276 = vmatpush1.bf16.msra.mxu0 0
    %1277 = vmatprep.subr.bf16.mxu0 0
    %1278 = vmatpush1.bf16.msra.mxu0 0
    %1279 = vmatprep.subr.bf16.mxu0 0
    %1280 = vmatpush1.bf16.msra.mxu0 0
    %1281 = vmatprep.subr.bf16.mxu0 0
    %1282 = vmatpush1.bf16.msra.mxu0 0
    %1283 = vmatprep.subr.bf16.mxu0 0
    %1284 = vmatpush1.bf16.msra.mxu0 0
    %1285 = vmatprep.mubr.bf16.mxu0 0
    %1286 = vmatmul.mubr.bf16.gmra.mrb[0].mxu0 %v1251
    %v1287 = vpop.f32.mrb[0].mxu0
    %v1288 = vadd.f32 %v1241, %v1287
    %v1289 = vpop.f32.mrb[0].mxu0
    %v1290 = vpop.f32.mrb[0].mxu0
    %v1291 = vpop.f32.mrb[0].mxu0
    %1292 = vdwg.mxu0
    %1293 = vst [vmem:[#allocation2] sm:$0x3] %v1288
    // Predicated region
    $region38: #{regression_model_forward.1} parent=1 // pred_check
      _
    $region39: #{regression_model_forward.1} parent=1 // pred_check_branch
      %1295 = sbr.rel (0) target = $region41
    $region40: #{regression_model_forward.1} parent=1 // pred_region
      %s1297 = ssub.s32 32, 32
      %1298 = vsyncadd [#allocation3], %s1297
      %s1300 = sshll.u32 [#allocation2], 4
      %s1301 = int_to_ptr.vmem [resolvable:$true] %s1300
      %1303 = dma.vmem_to_hbm [thread:$0]  %s1301, 32, %s9, [#allocation3]
    $region41: #{regression_model_forward.1} parent=1 // pred_fallthru
      _
    // Predicated region
    $region42: #{regression_model_forward.1} parent=1 // pred_check
      _
    $region43: #{regression_model_forward.1} parent=1 // pred_check_branch
      %1305 = sbr.rel (0) target = $region45
    $region44: #{regression_model_forward.1} parent=1 // pred_region
      %1306 = dma.done [#allocation3], 32
    $region45: #{regression_model_forward.1} parent=1 // pred_fallthru
      _
    %1307 = vsyncpa [#allocation3], 1

</llo_original>
